<compile_context>
chip_gen: v7x
topology: tpu7x:2x2x1
jax: 0.10.0
libtpu: 0.0.40
codegen_flags: <defaults>
</compile_context>

<pallas_src>
import functools
import math

import jax
import jax.numpy as jnp
from jax import lax
from jax.experimental import pallas as pl
from jax.experimental.pallas import tpu as pltpu

LN_EPS = 1e-5


def _merge_kernel(x_ref, w0_ref, w1_ref, p_ref, o_ref, *, w, C, N):
    """Fused 2x2-gather + Linear(4C->2C) + LayerNorm(2C) on one row-pair slab.

    x_ref : (R, 4*w*C)  input row pairs, original dtype; cols = (s1, ww, s2, c)
    w0_ref: (2C, N) bf16  Linear weight rows for s1=0, regrouped to (s2, c)
    w1_ref: (2C, N) bf16  Linear weight rows for s1=1, regrouped to (s2, c)
    p_ref : (3, N)  f32   [linear bias; LN gamma; LN beta]
    o_ref : (R, w*N)      token ww occupies columns [ww*N, (ww+1)*N)
    """
    two_c = 2 * C
    s1_stride = w * two_c                    # column stride between the two s1 halves
    w0 = w0_ref[...]
    w1 = w1_ref[...]
    bias = p_ref[0:1, :]
    gamma = p_ref[1:2, :]
    beta = p_ref[2:3, :]
    # Static unroll over output token columns; each iteration is two MXU dots
    # with f32 accumulation plus an f32 LayerNorm on (R, N) rows.  Column
    # windows of width 2C / N are not always 128-lane aligned, which costs a
    # few lane rotates / masked stores -- hidden under the HBM stream.
    for ww in range(w):
        c0 = ww * two_c
        a0 = x_ref[:, c0:c0 + two_c].astype(jnp.bfloat16)
        a1 = x_ref[:, s1_stride + c0:s1_stride + c0 + two_c].astype(jnp.bfloat16)
        acc = jnp.dot(a0, w0, preferred_element_type=jnp.float32)
        acc = acc + jnp.dot(a1, w1, preferred_element_type=jnp.float32)
        acc = acc + bias
        mean = jnp.mean(acc, axis=-1, keepdims=True)
        d = acc - mean                        # reused for variance + normalize
        var = jnp.mean(d * d, axis=-1, keepdims=True)
        y = d * lax.rsqrt(var + LN_EPS) * gamma + beta
        o_ref[:, ww * N:(ww + 1) * N] = y.astype(o_ref.dtype)


def _round_up(a, b):
    return -(-a // b) * b


def _vmem_capacity_bytes():
    """Physical VMEM of the attached TPU; conservative 64 MiB (v7x) if unknown."""
    try:
        info = pltpu.get_tpu_info()
        for attr in ("vmem_capacity_bytes", "vmem_size_bytes", "vmem_bytes"):
            v = getattr(info, attr, None)
            if v:
                return int(v)
    except Exception:            # narrow scope: only the hardware query fallback
        pass
    return 64 << 20


def _choose_rowpair_tile(G, w, per_rp_bytes, block_budget, target_rows=1024):
    """Pick row-pair tile R and padded row-pair count Gp (>= G).

    Legal R without padding: an exact divisor of G that is a multiple of 8
    (sublane rule), or G itself.  Preference: >=256 output rows per step, an
    even (v7x-balanced) or single step count, then closest to ~target_rows
    output rows per step."""
    r_vmem = max(1, block_budget // max(per_rp_bytes, 1))
    cands = [d for d in range(8, G + 1, 8) if G % d == 0]
    if G <= r_vmem:
        cands.append(G)
    best = None
    for d in sorted(set(cands)):
        if d > r_vmem:
            continue
        steps = -(-G // d)
        rows = d * w
        score = (0 if rows >= 256 else 1,
                 0 if steps == 1 or steps % 2 == 0 else 1,
                 abs(rows - target_rows))
        if best is None or score < best[0]:
            best = (score, d)
    if best is not None:
        return best[1], G
    # Rare fallback (B*h not a multiple of 8 and too large for a single block):
    # pad the row-pair axis.  Padded rows produce finite LN(bias) junk that is
    # sliced off by the caller -- never reduced over.
    r_target = _round_up(max(8, -(-target_rows // w)), 8)
    R = max(8, min(r_target, (r_vmem // 8) * 8))
    return R, _round_up(G, R)


def merge_forward(x, w_t, bias, gamma, beta, *, out_dtype=None, target_rows=1024):
    """Swin patch-merge forward.

    x: (B, L, C) with L a perfect square of an even side.
    w_t: (4C, 2C) == nn.Linear(4C, 2C).weight.T.
    Returns (B, L//4, 2C) in out_dtype (default: x.dtype)."""
    B, L, C = x.shape
    side = math.isqrt(L)
    assert side * side == L and side % 2 == 0, f"L={L} must be an even square"
    h = w = side // 2
    K, N = 4 * C, 2 * C
    assert w_t.shape == (K, N)
    out_dtype = x.dtype if out_dtype is None else out_dtype

    G = B * h                                    # number of spatial row pairs
    x2d = x.reshape(G, 4 * w * C)                # free view; cols = (s1, ww, s2, c)

    # Linear weight regrouped per s1-half into (s2, c) row order (tiny, one-off).
    w0 = jnp.concatenate([w_t[0:C], w_t[2 * C:3 * C]], axis=0).astype(jnp.bfloat16)
    w1 = jnp.concatenate([w_t[C:2 * C], w_t[3 * C:4 * C]], axis=0).astype(jnp.bfloat16)
    params = jnp.stack([bias, gamma, beta]).astype(jnp.float32)          # (3, N)

    # ---- generation-aware tiling / VMEM budget ------------------------------
    in_isz = x.dtype.itemsize
    out_isz = jnp.dtype(out_dtype).itemsize
    # double-buffered in/out block bytes per row pair + a few f32 temps
    per_rp = 2 * (4 * w * C * in_isz) + 2 * (w * N * out_isz) + 16 * N
    # weights + packed params, double-buffered (fetched once: constant index map)
    fixed = 2 * 2 * (2 * C * N * 2) + 2 * (3 * N * 4)
    capacity = _vmem_capacity_bytes()
    cap = int(capacity * 0.78)       # ~50 MiB on v7x (64 MiB phys), ~100 MiB on v5e/v6e
    budget = max(4 << 20, cap - fixed - (6 << 20))
    R, Gp = _choose_rowpair_tile(G, w, per_rp, budget, target_rows)
    if Gp != G:
        x2d = jnp.pad(x2d, ((0, Gp - G), (0, 0)))
    grid = Gp // R
    vmem_limit = int(min(capacity * 0.92,
                         max(cap, fixed + R * per_rp + (6 << 20))))

    M = B * h * w                                # true output rows
    cost = pl.CostEstimate(
        flops=2 * M * K * N,
        transcendentals=M,
        bytes_accessed=(Gp * 4 * w * C * in_isz + Gp * w * N * out_isz
                        + 2 * (2 * C * N * 2) + 3 * N * 4))

    kernel = functools.partial(_merge_kernel, w=w, C=C, N=N)
    out2d = pl.pallas_call(
        kernel,
        out_shape=jax.ShapeDtypeStruct((Gp, w * N), out_dtype),
        grid_spec=pltpu.PrefetchScalarGridSpec(
            num_scalar_prefetch=0,
            grid=(grid,),
            in_specs=[
                pl.BlockSpec((R, 4 * w * C), lambda i: (i, 0)),   # contiguous x slab
                pl.BlockSpec((2 * C, N), lambda i: (0, 0)),       # W half (s1=0), invariant
                pl.BlockSpec((2 * C, N), lambda i: (0, 0)),       # W half (s1=1), invariant
                pl.BlockSpec((3, N), lambda i: (0, 0)),           # bias/gamma/beta
            ],
            out_specs=pl.BlockSpec((R, w * N), lambda i: (i, 0)),
        ),
        compiler_params=pltpu.CompilerParams(
            dimension_semantics=("parallel",),
            vmem_limit_bytes=vmem_limit),
        cost_estimate=cost,
    )(x2d, w0, w1, params)

    if Gp != G:
        out2d = out2d[:G]
    return out2d.reshape(B, h * w, N)


def _merge_rearrange(x):
    """einops 'b (h s1 w s2) c -> b (h w) (s2 s1 c)', s1=s2=2 (reference only)."""
    B, L, C = x.shape
    side = math.isqrt(L)
    h = w = side // 2
    x = x.reshape(B, h, 2, w, 2, C)              # b h s1 w s2 c
    x = jnp.transpose(x, (0, 1, 3, 4, 2, 5))     # b h w s2 s1 c
    return x.reshape(B, h * w, 4 * C)


def merge_reference(x, w_t, bias, gamma, beta):
    # Mirrors kernel numerics: bf16-rounded operands, f32 matmul + LN stats.
    y = _merge_rearrange(x).astype(jnp.bfloat16).astype(jnp.float32)
    wf = w_t.astype(jnp.bfloat16).astype(jnp.float32)
    hmat = jnp.einsum("blk,kn->bln", y, wf,
                      precision=lax.Precision.HIGHEST) + bias
    mean = jnp.mean(hmat, axis=-1, keepdims=True)
    var = jnp.mean((hmat - mean) ** 2, axis=-1, keepdims=True)
    return (hmat - mean) * lax.rsqrt(var + LN_EPS) * gamma + beta


if __name__ == "__main__":
    # Small shapes consistent with the module: B=2, L=64 (8x8 tokens), C=32.
    B, L, C = 2, 64, 32
    K, N = 4 * C, 2 * C

    key = jax.random.PRNGKey(0)
    kx, kw, kb = jax.random.split(key, 3)

    x = jax.random.normal(kx, (B, L, C), dtype=jnp.float32)

    # Deterministic parameter init (nn.Linear-style uniform bound).
    bound = 1.0 / math.sqrt(K)
    w_t = jax.random.uniform(kw, (K, N), jnp.float32, -bound, bound)   # W^T
    bias = jax.random.uniform(kb, (N,), jnp.float32, -bound, bound)
    gamma = jnp.ones((N,), jnp.float32)     # LayerNorm weight
    beta = jnp.zeros((N,), jnp.float32)     # LayerNorm bias

    out = jax.block_until_ready(merge_forward(x, w_t, bias, gamma, beta))
    ref = jax.block_until_ready(merge_reference(x, w_t, bias, gamma, beta))

    assert out.shape == (B, L // 4, N), out.shape
    err = float(jnp.max(jnp.abs(out - ref)))
    assert err < 2e-3, err
    print("KERNEL_OK")
</pallas_src>

<mosaic_0001>
module attributes {stable_mosaic.version = 11 : i64} {
  func.func @_merge_kernel(%arg0: i32, %arg1: memref<8x512xf32, #tpu.memory_space<vmem>>, %arg2: memref<64x64xbf16, #tpu.memory_space<vmem>>, %arg3: memref<64x64xbf16, #tpu.memory_space<vmem>>, %arg4: memref<3x64xf32, #tpu.memory_space<vmem>>, %arg5: memref<8x256xf32, #tpu.memory_space<vmem>>) attributes {dimension_semantics = [#tpu.dimension_semantics<parallel>], iteration_bounds = array<i64: 1>, scalar_prefetch = 0 : i64, scratch_operands = 0 : i64, tpu.core_type = #tpu.core_type<tc>, window_params = [{transform_indices = @transform_0, window_bounds = array<i64: 8, 512>}, {pipeline_mode = #tpu.pipeline_mode<synchronous>, transform_indices = @transform_1, window_bounds = array<i64: 64, 64>}, {pipeline_mode = #tpu.pipeline_mode<synchronous>, transform_indices = @transform_2, window_bounds = array<i64: 64, 64>}, {pipeline_mode = #tpu.pipeline_mode<synchronous>, transform_indices = @transform_3, window_bounds = array<i64: 3, 64>}, {transform_indices = @transform_4, window_bounds = array<i64: 8, 256>}]} {
    %c0 = arith.constant 0 : index
    %c0_0 = arith.constant 0 : index
    %0 = vector.load %arg2[%c0, %c0_0] : memref<64x64xbf16, #tpu.memory_space<vmem>>, vector<64x64xbf16>
    %c0_1 = arith.constant 0 : index
    %c0_2 = arith.constant 0 : index
    %1 = vector.load %arg3[%c0_1, %c0_2] : memref<64x64xbf16, #tpu.memory_space<vmem>>, vector<64x64xbf16>
    %c0_3 = arith.constant 0 : index
    %c0_4 = arith.constant 0 : index
    %2 = vector.load %arg4[%c0_3, %c0_4] : memref<3x64xf32, #tpu.memory_space<vmem>>, vector<1x64xf32>
    %c1 = arith.constant 1 : index
    %c0_5 = arith.constant 0 : index
    %3 = vector.load %arg4[%c1, %c0_5] : memref<3x64xf32, #tpu.memory_space<vmem>>, vector<1x64xf32>
    %c2 = arith.constant 2 : index
    %c0_6 = arith.constant 0 : index
    %4 = vector.load %arg4[%c2, %c0_6] : memref<3x64xf32, #tpu.memory_space<vmem>>, vector<1x64xf32>
    %c0_7 = arith.constant 0 : index
    %c0_8 = arith.constant 0 : index
    %5 = vector.load %arg1[%c0_7, %c0_8] : memref<8x512xf32, #tpu.memory_space<vmem>>, vector<8x64xf32>
    %6 = arith.truncf %5 : vector<8x64xf32> to vector<8x64xbf16>
    %c0_9 = arith.constant 0 : index
    %c256 = arith.constant 256 : index
    %7 = vector.load %arg1[%c0_9, %c256] : memref<8x512xf32, #tpu.memory_space<vmem>>, vector<8x64xf32>
    %8 = arith.truncf %7 : vector<8x64xf32> to vector<8x64xbf16>
    %cst = arith.constant dense<0.000000e+00> : vector<8x64xf32>
    %9 = tpu.matmul %6, %0, %cst {dimension_numbers = #tpu.dot_dimension_numbers<[1], [0], [0], [1], [0, 0, 1, 1], [], []>} : vector<8x64xbf16>, vector<64x64xbf16>, vector<8x64xf32> -> vector<8x64xf32>
    %cst_10 = arith.constant dense<0.000000e+00> : vector<8x64xf32>
    %10 = tpu.matmul %8, %1, %cst_10 {dimension_numbers = #tpu.dot_dimension_numbers<[1], [0], [0], [1], [0, 0, 1, 1], [], []>} : vector<8x64xbf16>, vector<64x64xbf16>, vector<8x64xf32> -> vector<8x64xf32>
    %11 = arith.addf %9, %10 : vector<8x64xf32>
    %12 = vector.broadcast %2 : vector<1x64xf32> to vector<8x64xf32>
    %13 = arith.addf %11, %12 : vector<8x64xf32>
    %cst_11 = arith.constant dense<0.000000e+00> : vector<8xf32>
    %14 = vector.multi_reduction <add>, %13, %cst_11 [1] : vector<8x64xf32> to vector<8xf32>
    %15 = vector.shape_cast %14 : vector<8xf32> to vector<8x1xf32>
    %cst_12 = arith.constant 6.400000e+01 : f32
    %16 = vector.broadcast %cst_12 : f32 to vector<8x1xf32>
    %17 = arith.divf %15, %16 : vector<8x1xf32>
    %18 = vector.broadcast %17 : vector<8x1xf32> to vector<8x64xf32>
    %19 = arith.subf %13, %18 : vector<8x64xf32>
    %20 = arith.mulf %19, %19 : vector<8x64xf32>
    %cst_13 = arith.constant dense<0.000000e+00> : vector<8xf32>
    %21 = vector.multi_reduction <add>, %20, %cst_13 [1] : vector<8x64xf32> to vector<8xf32>
    %22 = vector.shape_cast %21 : vector<8xf32> to vector<8x1xf32>
    %cst_14 = arith.constant 6.400000e+01 : f32
    %23 = vector.broadcast %cst_14 : f32 to vector<8x1xf32>
    %24 = arith.divf %22, %23 : vector<8x1xf32>
    %cst_15 = arith.constant 9.99999974E-6 : f32
    %25 = vector.broadcast %cst_15 : f32 to vector<8x1xf32>
    %26 = arith.addf %24, %25 : vector<8x1xf32>
    %27 = math.rsqrt %26 : vector<8x1xf32>
    %28 = vector.broadcast %27 : vector<8x1xf32> to vector<8x64xf32>
    %29 = arith.mulf %19, %28 : vector<8x64xf32>
    %30 = vector.broadcast %3 : vector<1x64xf32> to vector<8x64xf32>
    %31 = arith.mulf %29, %30 : vector<8x64xf32>
    %32 = vector.broadcast %4 : vector<1x64xf32> to vector<8x64xf32>
    %33 = arith.addf %31, %32 : vector<8x64xf32>
    %c0_16 = arith.constant 0 : index
    %c0_17 = arith.constant 0 : index
    %34 = vector.load %arg5[%c0_16, %c0_17] : memref<8x256xf32, #tpu.memory_space<vmem>>, vector<8x64xf32>
    tpu.vector_store %arg5[%c0_16, %c0_17], %33 {strides = array<i32>} : memref<8x256xf32, #tpu.memory_space<vmem>>, vector<8x64xf32>,
    %c0_18 = arith.constant 0 : index
    %c64 = arith.constant 64 : index
    %35 = vector.load %arg1[%c0_18, %c64] : memref<8x512xf32, #tpu.memory_space<vmem>>, vector<8x64xf32>
    %36 = arith.truncf %35 : vector<8x64xf32> to vector<8x64xbf16>
    %c0_19 = arith.constant 0 : index
    %c320 = arith.constant 320 : index
    %37 = vector.load %arg1[%c0_19, %c320] : memref<8x512xf32, #tpu.memory_space<vmem>>, vector<8x64xf32>
    %38 = arith.truncf %37 : vector<8x64xf32> to vector<8x64xbf16>
    %cst_20 = arith.constant dense<0.000000e+00> : vector<8x64xf32>
    %39 = tpu.matmul %36, %0, %cst_20 {dimension_numbers = #tpu.dot_dimension_numbers<[1], [0], [0], [1], [0, 0, 1, 1], [], []>} : vector<8x64xbf16>, vector<64x64xbf16>, vector<8x64xf32> -> vector<8x64xf32>
    %cst_21 = arith.constant dense<0.000000e+00> : vector<8x64xf32>
    %40 = tpu.matmul %38, %1, %cst_21 {dimension_numbers = #tpu.dot_dimension_numbers<[1], [0], [0], [1], [0, 0, 1, 1], [], []>} : vector<8x64xbf16>, vector<64x64xbf16>, vector<8x64xf32> -> vector<8x64xf32>
    %41 = arith.addf %39, %40 : vector<8x64xf32>
    %42 = vector.broadcast %2 : vector<1x64xf32> to vector<8x64xf32>
    %43 = arith.addf %41, %42 : vector<8x64xf32>
    %cst_22 = arith.constant dense<0.000000e+00> : vector<8xf32>
    %44 = vector.multi_reduction <add>, %43, %cst_22 [1] : vector<8x64xf32> to vector<8xf32>
    %45 = vector.shape_cast %44 : vector<8xf32> to vector<8x1xf32>
    %cst_23 = arith.constant 6.400000e+01 : f32
    %46 = vector.broadcast %cst_23 : f32 to vector<8x1xf32>
    %47 = arith.divf %45, %46 : vector<8x1xf32>
    %48 = vector.broadcast %47 : vector<8x1xf32> to vector<8x64xf32>
    %49 = arith.subf %43, %48 : vector<8x64xf32>
    %50 = arith.mulf %49, %49 : vector<8x64xf32>
    %cst_24 = arith.constant dense<0.000000e+00> : vector<8xf32>
    %51 = vector.multi_reduction <add>, %50, %cst_24 [1] : vector<8x64xf32> to vector<8xf32>
    %52 = vector.shape_cast %51 : vector<8xf32> to vector<8x1xf32>
    %cst_25 = arith.constant 6.400000e+01 : f32
    %53 = vector.broadcast %cst_25 : f32 to vector<8x1xf32>
    %54 = arith.divf %52, %53 : vector<8x1xf32>
    %cst_26 = arith.constant 9.99999974E-6 : f32
    %55 = vector.broadcast %cst_26 : f32 to vector<8x1xf32>
    %56 = arith.addf %54, %55 : vector<8x1xf32>
    %57 = math.rsqrt %56 : vector<8x1xf32>
    %58 = vector.broadcast %57 : vector<8x1xf32> to vector<8x64xf32>
    %59 = arith.mulf %49, %58 : vector<8x64xf32>
    %60 = vector.broadcast %3 : vector<1x64xf32> to vector<8x64xf32>
    %61 = arith.mulf %59, %60 : vector<8x64xf32>
    %62 = vector.broadcast %4 : vector<1x64xf32> to vector<8x64xf32>
    %63 = arith.addf %61, %62 : vector<8x64xf32>
    %c0_27 = arith.constant 0 : index
    %c64_28 = arith.constant 64 : index
    %64 = vector.load %arg5[%c0_27, %c64_28] : memref<8x256xf32, #tpu.memory_space<vmem>>, vector<8x64xf32>
    tpu.vector_store %arg5[%c0_27, %c64_28], %63 {strides = array<i32>} : memref<8x256xf32, #tpu.memory_space<vmem>>, vector<8x64xf32>,
    %c0_29 = arith.constant 0 : index
    %c128 = arith.constant 128 : index
    %65 = vector.load %arg1[%c0_29, %c128] : memref<8x512xf32, #tpu.memory_space<vmem>>, vector<8x64xf32>
    %66 = arith.truncf %65 : vector<8x64xf32> to vector<8x64xbf16>
    %c0_30 = arith.constant 0 : index
    %c384 = arith.constant 384 : index
    %67 = vector.load %arg1[%c0_30, %c384] : memref<8x512xf32, #tpu.memory_space<vmem>>, vector<8x64xf32>
    %68 = arith.truncf %67 : vector<8x64xf32> to vector<8x64xbf16>
    %cst_31 = arith.constant dense<0.000000e+00> : vector<8x64xf32>
    %69 = tpu.matmul %66, %0, %cst_31 {dimension_numbers = #tpu.dot_dimension_numbers<[1], [0], [0], [1], [0, 0, 1, 1], [], []>} : vector<8x64xbf16>, vector<64x64xbf16>, vector<8x64xf32> -> vector<8x64xf32>
    %cst_32 = arith.constant dense<0.000000e+00> : vector<8x64xf32>
    %70 = tpu.matmul %68, %1, %cst_32 {dimension_numbers = #tpu.dot_dimension_numbers<[1], [0], [0], [1], [0, 0, 1, 1], [], []>} : vector<8x64xbf16>, vector<64x64xbf16>, vector<8x64xf32> -> vector<8x64xf32>
    %71 = arith.addf %69, %70 : vector<8x64xf32>
    %72 = vector.broadcast %2 : vector<1x64xf32> to vector<8x64xf32>
    %73 = arith.addf %71, %72 : vector<8x64xf32>
    %cst_33 = arith.constant dense<0.000000e+00> : vector<8xf32>
    %74 = vector.multi_reduction <add>, %73, %cst_33 [1] : vector<8x64xf32> to vector<8xf32>
    %75 = vector.shape_cast %74 : vector<8xf32> to vector<8x1xf32>
    %cst_34 = arith.constant 6.400000e+01 : f32
    %76 = vector.broadcast %cst_34 : f32 to vector<8x1xf32>
    %77 = arith.divf %75, %76 : vector<8x1xf32>
    %78 = vector.broadcast %77 : vector<8x1xf32> to vector<8x64xf32>
    %79 = arith.subf %73, %78 : vector<8x64xf32>
    %80 = arith.mulf %79, %79 : vector<8x64xf32>
    %cst_35 = arith.constant dense<0.000000e+00> : vector<8xf32>
    %81 = vector.multi_reduction <add>, %80, %cst_35 [1] : vector<8x64xf32> to vector<8xf32>
    %82 = vector.shape_cast %81 : vector<8xf32> to vector<8x1xf32>
    %cst_36 = arith.constant 6.400000e+01 : f32
    %83 = vector.broadcast %cst_36 : f32 to vector<8x1xf32>
    %84 = arith.divf %82, %83 : vector<8x1xf32>
    %cst_37 = arith.constant 9.99999974E-6 : f32
    %85 = vector.broadcast %cst_37 : f32 to vector<8x1xf32>
    %86 = arith.addf %84, %85 : vector<8x1xf32>
    %87 = math.rsqrt %86 : vector<8x1xf32>
    %88 = vector.broadcast %87 : vector<8x1xf32> to vector<8x64xf32>
    %89 = arith.mulf %79, %88 : vector<8x64xf32>
    %90 = vector.broadcast %3 : vector<1x64xf32> to vector<8x64xf32>
    %91 = arith.mulf %89, %90 : vector<8x64xf32>
    %92 = vector.broadcast %4 : vector<1x64xf32> to vector<8x64xf32>
    %93 = arith.addf %91, %92 : vector<8x64xf32>
    %c0_38 = arith.constant 0 : index
    %c128_39 = arith.constant 128 : index
    %94 = vector.load %arg5[%c0_38, %c128_39] : memref<8x256xf32, #tpu.memory_space<vmem>>, vector<8x64xf32>
    tpu.vector_store %arg5[%c0_38, %c128_39], %93 {strides = array<i32>} : memref<8x256xf32, #tpu.memory_space<vmem>>, vector<8x64xf32>,
    %c0_40 = arith.constant 0 : index
    %c192 = arith.constant 192 : index
    %95 = vector.load %arg1[%c0_40, %c192] : memref<8x512xf32, #tpu.memory_space<vmem>>, vector<8x64xf32>
    %96 = arith.truncf %95 : vector<8x64xf32> to vector<8x64xbf16>
    %c0_41 = arith.constant 0 : index
    %c448 = arith.constant 448 : index
    %97 = vector.load %arg1[%c0_41, %c448] : memref<8x512xf32, #tpu.memory_space<vmem>>, vector<8x64xf32>
    %98 = arith.truncf %97 : vector<8x64xf32> to vector<8x64xbf16>
    %cst_42 = arith.constant dense<0.000000e+00> : vector<8x64xf32>
    %99 = tpu.matmul %96, %0, %cst_42 {dimension_numbers = #tpu.dot_dimension_numbers<[1], [0], [0], [1], [0, 0, 1, 1], [], []>} : vector<8x64xbf16>, vector<64x64xbf16>, vector<8x64xf32> -> vector<8x64xf32>
    %cst_43 = arith.constant dense<0.000000e+00> : vector<8x64xf32>
    %100 = tpu.matmul %98, %1, %cst_43 {dimension_numbers = #tpu.dot_dimension_numbers<[1], [0], [0], [1], [0, 0, 1, 1], [], []>} : vector<8x64xbf16>, vector<64x64xbf16>, vector<8x64xf32> -> vector<8x64xf32>
    %101 = arith.addf %99, %100 : vector<8x64xf32>
    %102 = vector.broadcast %2 : vector<1x64xf32> to vector<8x64xf32>
    %103 = arith.addf %101, %102 : vector<8x64xf32>
    %cst_44 = arith.constant dense<0.000000e+00> : vector<8xf32>
    %104 = vector.multi_reduction <add>, %103, %cst_44 [1] : vector<8x64xf32> to vector<8xf32>
    %105 = vector.shape_cast %104 : vector<8xf32> to vector<8x1xf32>
    %cst_45 = arith.constant 6.400000e+01 : f32
    %106 = vector.broadcast %cst_45 : f32 to vector<8x1xf32>
    %107 = arith.divf %105, %106 : vector<8x1xf32>
    %108 = vector.broadcast %107 : vector<8x1xf32> to vector<8x64xf32>
    %109 = arith.subf %103, %108 : vector<8x64xf32>
    %110 = arith.mulf %109, %109 : vector<8x64xf32>
    %cst_46 = arith.constant dense<0.000000e+00> : vector<8xf32>
    %111 = vector.multi_reduction <add>, %110, %cst_46 [1] : vector<8x64xf32> to vector<8xf32>
    %112 = vector.shape_cast %111 : vector<8xf32> to vector<8x1xf32>
    %cst_47 = arith.constant 6.400000e+01 : f32
    %113 = vector.broadcast %cst_47 : f32 to vector<8x1xf32>
    %114 = arith.divf %112, %113 : vector<8x1xf32>
    %cst_48 = arith.constant 9.99999974E-6 : f32
    %115 = vector.broadcast %cst_48 : f32 to vector<8x1xf32>
    %116 = arith.addf %114, %115 : vector<8x1xf32>
    %117 = math.rsqrt %116 : vector<8x1xf32>
    %118 = vector.broadcast %117 : vector<8x1xf32> to vector<8x64xf32>
    %119 = arith.mulf %109, %118 : vector<8x64xf32>
    %120 = vector.broadcast %3 : vector<1x64xf32> to vector<8x64xf32>
    %121 = arith.mulf %119, %120 : vector<8x64xf32>
    %122 = vector.broadcast %4 : vector<1x64xf32> to vector<8x64xf32>
    %123 = arith.addf %121, %122 : vector<8x64xf32>
    %c0_49 = arith.constant 0 : index
    %c192_50 = arith.constant 192 : index
    %124 = vector.load %arg5[%c0_49, %c192_50] : memref<8x256xf32, #tpu.memory_space<vmem>>, vector<8x64xf32>
    tpu.vector_store %arg5[%c0_49, %c192_50], %123 {strides = array<i32>} : memref<8x256xf32, #tpu.memory_space<vmem>>, vector<8x64xf32>,
    return
  }
  func.func @transform_0(%arg0: i32) -> (i32, i32) {
    %c0_i32 = arith.constant 0 : i32
    %c0_i32_0 = arith.constant 0 : i32
    return %arg0, %c0_i32 : i32, i32
  }
  func.func @transform_1(%arg0: i32) -> (i32, i32) {
    %c0_i32 = arith.constant 0 : i32
    %c0_i32_0 = arith.constant 0 : i32
    %c0_i32_1 = arith.constant 0 : i32
    return %c0_i32, %c0_i32_0 : i32, i32
  }
  func.func @transform_2(%arg0: i32) -> (i32, i32) {
    %c0_i32 = arith.constant 0 : i32
    %c0_i32_0 = arith.constant 0 : i32
    %c0_i32_1 = arith.constant 0 : i32
    return %c0_i32, %c0_i32_0 : i32, i32
  }
  func.func @transform_3(%arg0: i32) -> (i32, i32) {
    %c0_i32 = arith.constant 0 : i32
    %c0_i32_0 = arith.constant 0 : i32
    %c0_i32_1 = arith.constant 0 : i32
    return %c0_i32, %c0_i32_0 : i32, i32
  }
  func.func @transform_4(%arg0: i32) -> (i32, i32) {
    %c0_i32 = arith.constant 0 : i32
    %c0_i32_0 = arith.constant 0 : i32
    return %arg0, %c0_i32 : i32, i32
  }
}

</mosaic_0001>

<llo_original>
// kernel: tpu_custom_call.1
$region0: #{tpu_custom_call.1}
  #allocation0 [shape = 'u32[]', space=smem, size = 0x4, offset = 0x4, fixed_abs, tag = 'smem constant byte address 0x4 - core index']
  #allocation1 [shape = 'u32[144,128]{1,0:T(1,128)}', space=vmem, size = 0x12000, scoped, tag = 'internal scratch']
  %s0 = inlined_call_operand.hbm [shape: f32[8,512], index: 0, kind: input, shape index: {}]
  %s1 = inlined_call_operand.hbm [shape: bf16[64,64], index: 1, kind: input, shape index: {}]
  %s2 = inlined_call_operand.hbm [shape: bf16[64,64], index: 2, kind: input, shape index: {}]
  %s3 = inlined_call_operand.vmem [shape: f32[3,64], index: 3, kind: input, shape index: {}]
  %s4 = inlined_call_operand.hbm [shape: f32[8,256], index: 4, kind: output, shape index: {}]
  %s5 = sld [smem:[#allocation0]]
  $region38: #{tpu_custom_call.1} parent=0
    _
  %s7 = ssub.s32 1, %s5
  %s8 = scalar_select 0, %s7, %s5
  $region1: #{tpu_custom_call.1} parent=0
    #allocation2 [shape = 'u8[16384]{0}', space=vmem, size = 0x4000, scoped, tag = 'input window, operand 0, single buffered']
    #allocation3 [shape = 's32[1]{0}', space=sflag, size = 0x4, scoped, tag = 'scoped memory for tpu_custom_call.1']
    #allocation4 [shape = 's32[1]{0}', space=sflag, size = 0x4, scoped, tag = 'scoped memory for tpu_custom_call.1']
    #allocation5 [shape = 'u8[16384]{0}', space=vmem, size = 0x4000, scoped, tag = 'input window, operand 1, single buffered']
    #allocation6 [shape = 's32[1]{0}', space=sflag, size = 0x4, scoped, tag = 'scoped memory for tpu_custom_call.1']
    #allocation7 [shape = 'u8[16384]{0}', space=vmem, size = 0x4000, scoped, tag = 'input window, operand 2, single buffered']
    #allocation8 [shape = 'u8[8192]{0}', space=vmem, size = 0x2000, scoped, tag = 'output window, operand 0, single buffered']
    %9 = vsyncpa [#allocation3], 0
    %10 = vsyncpa [#allocation6], 0
    %11 = vsyncpa [#allocation4], 0
    // Predicated region
    $region2: #{tpu_custom_call.1} parent=1 // pred_check
      _
    $region3: #{tpu_custom_call.1} parent=1 // pred_check_branch
      %13 = sbr.rel (0) target = $region5
    $region4: #{tpu_custom_call.1} parent=1 // pred_region
      %s15 = ssub.s32 512, 512
      %16 = vsyncadd [#allocation3], %s15
      %s18 = sshll.u32 [#allocation2], 4
      %s19 = int_to_ptr.vmem [resolvable:$true] %s18
      %21 = dma.hbm_to_vmem [thread:$0]  %s0, 512, %s19, [#allocation3]
    $region5: #{tpu_custom_call.1} parent=1 // pred_fallthru
      _
    // Predicated region
    $region6: #{tpu_custom_call.1} parent=1 // pred_check
      _
    $region7: #{tpu_custom_call.1} parent=1 // pred_check_branch
      %23 = sbr.rel (0) target = $region9
    $region8: #{tpu_custom_call.1} parent=1 // pred_region
      %s25 = ssub.s32 512, 512
      %26 = vsyncadd [#allocation6], %s25
      %s27 = sshll.u32 [#allocation5], 4
      %s28 = int_to_ptr.vmem [resolvable:$true] %s27
      %33 = dma.hbm_to_vmem [thread:$0]  %s1, 512, %s28, [#allocation6], 64, 64, 4
    $region9: #{tpu_custom_call.1} parent=1 // pred_fallthru
      _
    // Predicated region
    $region10: #{tpu_custom_call.1} parent=1 // pred_check
      _
    $region11: #{tpu_custom_call.1} parent=1 // pred_check_branch
      %35 = sbr.rel (0) target = $region13
    $region12: #{tpu_custom_call.1} parent=1 // pred_region
      %s37 = ssub.s32 512, 512
      %38 = vsyncadd [#allocation6], %s37
      %s39 = sshll.u32 [#allocation7], 4
      %s40 = int_to_ptr.vmem [resolvable:$true] %s39
      %45 = dma.hbm_to_vmem [thread:$0]  %s2, 512, %s40, [#allocation6], 64, 64, 4
    $region13: #{tpu_custom_call.1} parent=1 // pred_fallthru
      _
    // Predicated region
    $region14: #{tpu_custom_call.1} parent=1 // pred_check
      _
    $region15: #{tpu_custom_call.1} parent=1 // pred_check_branch
      %47 = sbr.rel (0) target = $region17
    $region16: #{tpu_custom_call.1} parent=1 // pred_region
      _
    $region17: #{tpu_custom_call.1} parent=1 // pred_fallthru
      _
    // Predicated region
    $region18: #{tpu_custom_call.1} parent=1 // pred_check
      _
    $region19: #{tpu_custom_call.1} parent=1 // pred_check_branch
      %49 = sbr.rel (0) target = $region21
    $region20: #{tpu_custom_call.1} parent=1 // pred_region
      %50 = dma.done [#allocation3], 512
    $region21: #{tpu_custom_call.1} parent=1 // pred_fallthru
      _
    // Predicated region
    $region22: #{tpu_custom_call.1} parent=1 // pred_check
      _
    $region23: #{tpu_custom_call.1} parent=1 // pred_check_branch
      %52 = sbr.rel (0) target = $region25
    $region24: #{tpu_custom_call.1} parent=1 // pred_region
      %53 = dma.done [#allocation6], 512
    $region25: #{tpu_custom_call.1} parent=1 // pred_fallthru
      _
    // Predicated region
    $region26: #{tpu_custom_call.1} parent=1 // pred_check
      _
    $region27: #{tpu_custom_call.1} parent=1 // pred_check_branch
      %55 = sbr.rel (0) target = $region29
    $region28: #{tpu_custom_call.1} parent=1 // pred_region
      %56 = dma.done [#allocation6], 512
    $region29: #{tpu_custom_call.1} parent=1 // pred_fallthru
      _
    %v58 = vld [vmem:[#allocation5] sm:$0xf]
    %v59 = vld [vmem:[#allocation5 + $0x4] sm:$0xf]
    %v60 = vld [vmem:[#allocation5 + $0x8] sm:$0xf]
    %v61 = vld [vmem:[#allocation5 + $0xc] sm:$0xf]
    %v62 = vld [vmem:[#allocation5 + $0x10] sm:$0xf]
    %v63 = vld [vmem:[#allocation5 + $0x14] sm:$0xf]
    %v64 = vld [vmem:[#allocation5 + $0x18] sm:$0xf]
    %v65 = vld [vmem:[#allocation5 + $0x1c] sm:$0xf]
    %v66 = vld [vmem:[#allocation7] sm:$0xf]
    %v67 = vld [vmem:[#allocation7 + $0x4] sm:$0xf]
    %v68 = vld [vmem:[#allocation7 + $0x8] sm:$0xf]
    %v69 = vld [vmem:[#allocation7 + $0xc] sm:$0xf]
    %v70 = vld [vmem:[#allocation7 + $0x10] sm:$0xf]
    %v71 = vld [vmem:[#allocation7 + $0x14] sm:$0xf]
    %v72 = vld [vmem:[#allocation7 + $0x18] sm:$0xf]
    %v73 = vld [vmem:[#allocation7 + $0x1c] sm:$0xf]
    %v74 = vld [vmem:[%s3] sm:$0x1]
    %v75 = vld [vmem:[%s3 + $0x1] sm:$0x1]
    %v76 = vld [vmem:[%s3 + $0x2] sm:$0x1]
    %v77 = vld [vmem:[#allocation2] sm:$0xff]
    %v78 = vpack.c.bf16 %v77, %v77
    %v79 = vld [vmem:[#allocation2 + $0x10] sm:$0xff]
    %v80 = vpack.c.bf16 %v79, %v79
    %v89 = vunpack.c.l.b16 %v66
    %v90 = vunpack.c.l.b16 %v67
    %v91 = vunpack.c.l.b16 %v68
    %v92 = vunpack.c.l.b16 %v69
    %v93 = vunpack.c.l.b16 %v70
    %v94 = vunpack.c.l.b16 %v71
    %v95 = vunpack.c.l.b16 %v72
    %v96 = vunpack.c.l.b16 %v73
    %v97 = vpack.c.b16 %v90, %v89
    %v98 = vpack.c.b16 %v92, %v91
    %v99 = vpack.c.b16 %v94, %v93
    %v100 = vpack.c.b16 %v96, %v95
    %vm105 = vcmask 523264
    %v107 = vsel %vm105, %v80, 0
    %109 = vmatprep.subr.bf16.mxu0 0
    %110 = vmatpush1.bf16.msra.mxu0 %v97
    %111 = vmatprep.subr.bf16.mxu0 0
    %112 = vmatpush1.bf16.msra.mxu0 %v98
    %113 = vmatprep.subr.bf16.mxu0 0
    %114 = vmatpush1.bf16.msra.mxu0 %v99
    %115 = vmatprep.subr.bf16.mxu0 0
    %116 = vmatpush1.bf16.msra.mxu0 %v100
    %117 = vmatprep.subr.bf16.mxu0 0
    %118 = vmatpush1.bf16.msra.mxu0 0
    %119 = vmatprep.subr.bf16.mxu0 0
    %120 = vmatpush1.bf16.msra.mxu0 0
    %121 = vmatprep.subr.bf16.mxu0 0
    %122 = vmatpush1.bf16.msra.mxu0 0
    %123 = vmatprep.subr.bf16.mxu0 0
    %124 = vmatpush1.bf16.msra.mxu0 0
    %125 = vmatprep.subr.bf16.mxu0 0
    %126 = vmatpush1.bf16.msra.mxu0 0
    %127 = vmatprep.subr.bf16.mxu0 0
    %128 = vmatpush1.bf16.msra.mxu0 0
    %129 = vmatprep.subr.bf16.mxu0 0
    %130 = vmatpush1.bf16.msra.mxu0 0
    %131 = vmatprep.subr.bf16.mxu0 0
    %132 = vmatpush1.bf16.msra.mxu0 0
    %133 = vmatprep.subr.bf16.mxu0 0
    %134 = vmatpush1.bf16.msra.mxu0 0
    %135 = vmatprep.subr.bf16.mxu0 0
    %136 = vmatpush1.bf16.msra.mxu0 0
    %137 = vmatprep.subr.bf16.mxu0 0
    %138 = vmatpush1.bf16.msra.mxu0 0
    %139 = vmatprep.subr.bf16.mxu0 0
    %140 = vmatpush1.bf16.msra.mxu0 0
    %141 = vmatprep.mubr.bf16.mxu0 0
    %142 = vmatmul.mubr.bf16.gmra.mrb[0].mxu0 %v107
    %v143 = vpop.f32.mrb[0].mxu0
    %v144 = vadd.f32 0.0, %v143
    %v145 = vpop.f32.mrb[0].mxu0
    %v146 = vpop.f32.mrb[0].mxu0
    %v147 = vpop.f32.mrb[0].mxu0
    %148 = vdwg.mxu0
    %v157 = vunpack.c.l.b16 %v58
    %v158 = vunpack.c.l.b16 %v59
    %v159 = vunpack.c.l.b16 %v60
    %v160 = vunpack.c.l.b16 %v61
    %v161 = vunpack.c.l.b16 %v62
    %v162 = vunpack.c.l.b16 %v63
    %v163 = vunpack.c.l.b16 %v64
    %v164 = vunpack.c.l.b16 %v65
    %v165 = vpack.c.b16 %v158, %v157
    %v166 = vpack.c.b16 %v160, %v159
    %v167 = vpack.c.b16 %v162, %v161
    %v168 = vpack.c.b16 %v164, %v163
    %v174 = vsel %vm105, %v78, 0
    %176 = vmatprep.subr.bf16.mxu0 0
    %177 = vmatpush1.bf16.msra.mxu0 %v165
    %178 = vmatprep.subr.bf16.mxu0 0
    %179 = vmatpush1.bf16.msra.mxu0 %v166
    %180 = vmatprep.subr.bf16.mxu0 0
    %181 = vmatpush1.bf16.msra.mxu0 %v167
    %182 = vmatprep.subr.bf16.mxu0 0
    %183 = vmatpush1.bf16.msra.mxu0 %v168
    %184 = vmatprep.subr.bf16.mxu0 0
    %185 = vmatpush1.bf16.msra.mxu0 0
    %186 = vmatprep.subr.bf16.mxu0 0
    %187 = vmatpush1.bf16.msra.mxu0 0
    %188 = vmatprep.subr.bf16.mxu0 0
    %189 = vmatpush1.bf16.msra.mxu0 0
    %190 = vmatprep.subr.bf16.mxu0 0
    %191 = vmatpush1.bf16.msra.mxu0 0
    %192 = vmatprep.subr.bf16.mxu0 0
    %193 = vmatpush1.bf16.msra.mxu0 0
    %194 = vmatprep.subr.bf16.mxu0 0
    %195 = vmatpush1.bf16.msra.mxu0 0
    %196 = vmatprep.subr.bf16.mxu0 0
    %197 = vmatpush1.bf16.msra.mxu0 0
    %198 = vmatprep.subr.bf16.mxu0 0
    %199 = vmatpush1.bf16.msra.mxu0 0
    %200 = vmatprep.subr.bf16.mxu0 0
    %201 = vmatpush1.bf16.msra.mxu0 0
    %202 = vmatprep.subr.bf16.mxu0 0
    %203 = vmatpush1.bf16.msra.mxu0 0
    %204 = vmatprep.subr.bf16.mxu0 0
    %205 = vmatpush1.bf16.msra.mxu0 0
    %206 = vmatprep.subr.bf16.mxu0 0
    %207 = vmatpush1.bf16.msra.mxu0 0
    %208 = vmatprep.mubr.bf16.mxu0 0
    %209 = vmatmul.mubr.bf16.gmra.mrb[0].mxu0 %v174
    %v210 = vpop.f32.mrb[0].mxu0
    %v211 = vadd.f32 %v144, %v210
    %v212 = vpop.f32.mrb[0].mxu0
    %v213 = vpop.f32.mrb[0].mxu0
    %v214 = vpop.f32.mrb[0].mxu0
    %215 = vdwg.mxu0
    %v216 = vlaneseq
    %v217 = vshrl.u32 %v216, 7
    %v218 = vsub.s32 0, %v217
    %v219 = vrot.slane %v74, %v218
    %v220 = vadd.f32 %v211, %v219
    %v221 = vsel %vm105, %v220, 0.0
    %222 = vadd.xlane.f32.xlu0 %v221
    %v223 = vpop.xlane.xlu0 %222
    %v224 = vrcp.pop 64.0
    %v225 = vmul.f32 %v223, %v224
    %v226 = vsub.f32 %v220, %v225
    %v227 = vmul.f32 %v226, %v226
    %v228 = vsel %vm105, %v227, 0.0
    %229 = vadd.xlane.f32.xlu0 %v228
    %v230 = vpop.xlane.xlu0 %229
    %v231 = vmul.f32 %v230, %v224
    %v232 = vadd.f32 %v231, 1e-05
    %v233 = vrsqrt.pop %v232
    %v234 = vmul.f32 %v226, %v233
    %v235 = vlaneseq
    %v236 = vshrl.u32 %v235, 7
    %v237 = vsub.s32 0, %v236
    %v238 = vrot.slane %v75, %v237
    %v239 = vmul.f32 %v234, %v238
    %v240 = vlaneseq
    %v241 = vshrl.u32 %v240, 7
    %v242 = vsub.s32 0, %v241
    %v243 = vrot.slane %v76, %v242
    %v244 = vadd.f32 %v239, %v243
    %245 = vst.msk [vmem:[#allocation8] sm:$0xff] %vm105, %v244
    %v246 = vld [vmem:[#allocation2] sm:$0xff]
    %v247 = vpack.c.bf16 %v246, %v246
    %v248 = vld [vmem:[#allocation2 + $0x10] sm:$0xff]
    %v249 = vpack.c.bf16 %v248, %v248
    %251 = vrot.lane.b32.xlu0 %v249, 64
    %v252 = vpop.permute.xlu0 %251
    %v254 = vsel %vm105, %v252, 0
    %256 = vmatprep.subr.bf16.mxu0 0
    %257 = vmatpush1.bf16.msra.mxu0 %v97
    %258 = vmatprep.subr.bf16.mxu0 0
    %259 = vmatpush1.bf16.msra.mxu0 %v98
    %260 = vmatprep.subr.bf16.mxu0 0
    %261 = vmatpush1.bf16.msra.mxu0 %v99
    %262 = vmatprep.subr.bf16.mxu0 0
    %263 = vmatpush1.bf16.msra.mxu0 %v100
    %264 = vmatprep.subr.bf16.mxu0 0
    %265 = vmatpush1.bf16.msra.mxu0 0
    %266 = vmatprep.subr.bf16.mxu0 0
    %267 = vmatpush1.bf16.msra.mxu0 0
    %268 = vmatprep.subr.bf16.mxu0 0
    %269 = vmatpush1.bf16.msra.mxu0 0
    %270 = vmatprep.subr.bf16.mxu0 0
    %271 = vmatpush1.bf16.msra.mxu0 0
    %272 = vmatprep.subr.bf16.mxu0 0
    %273 = vmatpush1.bf16.msra.mxu0 0
    %274 = vmatprep.subr.bf16.mxu0 0
    %275 = vmatpush1.bf16.msra.mxu0 0
    %276 = vmatprep.subr.bf16.mxu0 0
    %277 = vmatpush1.bf16.msra.mxu0 0
    %278 = vmatprep.subr.bf16.mxu0 0
    %279 = vmatpush1.bf16.msra.mxu0 0
    %280 = vmatprep.subr.bf16.mxu0 0
    %281 = vmatpush1.bf16.msra.mxu0 0
    %282 = vmatprep.subr.bf16.mxu0 0
    %283 = vmatpush1.bf16.msra.mxu0 0
    %284 = vmatprep.subr.bf16.mxu0 0
    %285 = vmatpush1.bf16.msra.mxu0 0
    %286 = vmatprep.subr.bf16.mxu0 0
    %287 = vmatpush1.bf16.msra.mxu0 0
    %288 = vmatprep.mubr.bf16.mxu0 0
    %289 = vmatmul.mubr.bf16.gmra.mrb[0].mxu0 %v254
    %v290 = vpop.f32.mrb[0].mxu0
    %v291 = vadd.f32 0.0, %v290
    %v292 = vpop.f32.mrb[0].mxu0
    %v293 = vpop.f32.mrb[0].mxu0
    %v294 = vpop.f32.mrb[0].mxu0
    %295 = vdwg.mxu0
    %297 = vrot.lane.b32.xlu0 %v247, 64
    %v298 = vpop.permute.xlu0 %297
    %v300 = vsel %vm105, %v298, 0
    %302 = vmatprep.subr.bf16.mxu0 0
    %303 = vmatpush1.bf16.msra.mxu0 %v165
    %304 = vmatprep.subr.bf16.mxu0 0
    %305 = vmatpush1.bf16.msra.mxu0 %v166
    %306 = vmatprep.subr.bf16.mxu0 0
    %307 = vmatpush1.bf16.msra.mxu0 %v167
    %308 = vmatprep.subr.bf16.mxu0 0
    %309 = vmatpush1.bf16.msra.mxu0 %v168
    %310 = vmatprep.subr.bf16.mxu0 0
    %311 = vmatpush1.bf16.msra.mxu0 0
    %312 = vmatprep.subr.bf16.mxu0 0
    %313 = vmatpush1.bf16.msra.mxu0 0
    %314 = vmatprep.subr.bf16.mxu0 0
    %315 = vmatpush1.bf16.msra.mxu0 0
    %316 = vmatprep.subr.bf16.mxu0 0
    %317 = vmatpush1.bf16.msra.mxu0 0
    %318 = vmatprep.subr.bf16.mxu0 0
    %319 = vmatpush1.bf16.msra.mxu0 0
    %320 = vmatprep.subr.bf16.mxu0 0
    %321 = vmatpush1.bf16.msra.mxu0 0
    %322 = vmatprep.subr.bf16.mxu0 0
    %323 = vmatpush1.bf16.msra.mxu0 0
    %324 = vmatprep.subr.bf16.mxu0 0
    %325 = vmatpush1.bf16.msra.mxu0 0
    %326 = vmatprep.subr.bf16.mxu0 0
    %327 = vmatpush1.bf16.msra.mxu0 0
    %328 = vmatprep.subr.bf16.mxu0 0
    %329 = vmatpush1.bf16.msra.mxu0 0
    %330 = vmatprep.subr.bf16.mxu0 0
    %331 = vmatpush1.bf16.msra.mxu0 0
    %332 = vmatprep.subr.bf16.mxu0 0
    %333 = vmatpush1.bf16.msra.mxu0 0
    %334 = vmatprep.mubr.bf16.mxu0 0
    %335 = vmatmul.mubr.bf16.gmra.mrb[0].mxu0 %v300
    %v336 = vpop.f32.mrb[0].mxu0
    %v337 = vadd.f32 %v291, %v336
    %v338 = vpop.f32.mrb[0].mxu0
    %v339 = vpop.f32.mrb[0].mxu0
    %v340 = vpop.f32.mrb[0].mxu0
    %341 = vdwg.mxu0
    %v342 = vadd.f32 %v337, %v219
    %v343 = vsel %vm105, %v342, 0.0
    %344 = vadd.xlane.f32.xlu0 %v343
    %v345 = vpop.xlane.xlu0 %344
    %v346 = vmul.f32 %v345, %v224
    %v347 = vsub.f32 %v342, %v346
    %v348 = vmul.f32 %v347, %v347
    %v349 = vsel %vm105, %v348, 0.0
    %350 = vadd.xlane.f32.xlu0 %v349
    %v351 = vpop.xlane.xlu0 %350
    %v352 = vmul.f32 %v351, %v224
    %v353 = vadd.f32 %v352, 1e-05
    %v354 = vrsqrt.pop %v353
    %v355 = vmul.f32 %v347, %v354
    %v356 = vmul.f32 %v355, %v238
    %v357 = vadd.f32 %v356, %v243
    %359 = vrot.lane.b32.xlu0 %v357, 64
    %v360 = vpop.permute.xlu0 %359
    %vm362 = vcmask 1048064
    %363 = vst.msk [vmem:[#allocation8] sm:$0xff] %vm362, %v360
    %v364 = vld [vmem:[#allocation2 + $0x8] sm:$0xff]
    %v365 = vpack.c.bf16 %v364, %v364
    %v366 = vld [vmem:[#allocation2 + $0x18] sm:$0xff]
    %v367 = vpack.c.bf16 %v366, %v366
    %v369 = vsel %vm105, %v367, 0
    %371 = vmatprep.subr.bf16.mxu0 0
    %372 = vmatpush1.bf16.msra.mxu0 %v97
    %373 = vmatprep.subr.bf16.mxu0 0
    %374 = vmatpush1.bf16.msra.mxu0 %v98
    %375 = vmatprep.subr.bf16.mxu0 0
    %376 = vmatpush1.bf16.msra.mxu0 %v99
    %377 = vmatprep.subr.bf16.mxu0 0
    %378 = vmatpush1.bf16.msra.mxu0 %v100
    %379 = vmatprep.subr.bf16.mxu0 0
    %380 = vmatpush1.bf16.msra.mxu0 0
    %381 = vmatprep.subr.bf16.mxu0 0
    %382 = vmatpush1.bf16.msra.mxu0 0
    %383 = vmatprep.subr.bf16.mxu0 0
    %384 = vmatpush1.bf16.msra.mxu0 0
    %385 = vmatprep.subr.bf16.mxu0 0
    %386 = vmatpush1.bf16.msra.mxu0 0
    %387 = vmatprep.subr.bf16.mxu0 0
    %388 = vmatpush1.bf16.msra.mxu0 0
    %389 = vmatprep.subr.bf16.mxu0 0
    %390 = vmatpush1.bf16.msra.mxu0 0
    %391 = vmatprep.subr.bf16.mxu0 0
    %392 = vmatpush1.bf16.msra.mxu0 0
    %393 = vmatprep.subr.bf16.mxu0 0
    %394 = vmatpush1.bf16.msra.mxu0 0
    %395 = vmatprep.subr.bf16.mxu0 0
    %396 = vmatpush1.bf16.msra.mxu0 0
    %397 = vmatprep.subr.bf16.mxu0 0
    %398 = vmatpush1.bf16.msra.mxu0 0
    %399 = vmatprep.subr.bf16.mxu0 0
    %400 = vmatpush1.bf16.msra.mxu0 0
    %401 = vmatprep.subr.bf16.mxu0 0
    %402 = vmatpush1.bf16.msra.mxu0 0
    %403 = vmatprep.mubr.bf16.mxu0 0
    %404 = vmatmul.mubr.bf16.gmra.mrb[0].mxu0 %v369
    %v405 = vpop.f32.mrb[0].mxu0
    %v406 = vadd.f32 0.0, %v405
    %v407 = vpop.f32.mrb[0].mxu0
    %v408 = vpop.f32.mrb[0].mxu0
    %v409 = vpop.f32.mrb[0].mxu0
    %410 = vdwg.mxu0
    %v412 = vsel %vm105, %v365, 0
    %414 = vmatprep.subr.bf16.mxu0 0
    %415 = vmatpush1.bf16.msra.mxu0 %v165
    %416 = vmatprep.subr.bf16.mxu0 0
    %417 = vmatpush1.bf16.msra.mxu0 %v166
    %418 = vmatprep.subr.bf16.mxu0 0
    %419 = vmatpush1.bf16.msra.mxu0 %v167
    %420 = vmatprep.subr.bf16.mxu0 0
    %421 = vmatpush1.bf16.msra.mxu0 %v168
    %422 = vmatprep.subr.bf16.mxu0 0
    %423 = vmatpush1.bf16.msra.mxu0 0
    %424 = vmatprep.subr.bf16.mxu0 0
    %425 = vmatpush1.bf16.msra.mxu0 0
    %426 = vmatprep.subr.bf16.mxu0 0
    %427 = vmatpush1.bf16.msra.mxu0 0
    %428 = vmatprep.subr.bf16.mxu0 0
    %429 = vmatpush1.bf16.msra.mxu0 0
    %430 = vmatprep.subr.bf16.mxu0 0
    %431 = vmatpush1.bf16.msra.mxu0 0
    %432 = vmatprep.subr.bf16.mxu0 0
    %433 = vmatpush1.bf16.msra.mxu0 0
    %434 = vmatprep.subr.bf16.mxu0 0
    %435 = vmatpush1.bf16.msra.mxu0 0
    %436 = vmatprep.subr.bf16.mxu0 0
    %437 = vmatpush1.bf16.msra.mxu0 0
    %438 = vmatprep.subr.bf16.mxu0 0
    %439 = vmatpush1.bf16.msra.mxu0 0
    %440 = vmatprep.subr.bf16.mxu0 0
    %441 = vmatpush1.bf16.msra.mxu0 0
    %442 = vmatprep.subr.bf16.mxu0 0
    %443 = vmatpush1.bf16.msra.mxu0 0
    %444 = vmatprep.subr.bf16.mxu0 0
    %445 = vmatpush1.bf16.msra.mxu0 0
    %446 = vmatprep.mubr.bf16.mxu0 0
    %447 = vmatmul.mubr.bf16.gmra.mrb[0].mxu0 %v412
    %v448 = vpop.f32.mrb[0].mxu0
    %v449 = vadd.f32 %v406, %v448
    %v450 = vpop.f32.mrb[0].mxu0
    %v451 = vpop.f32.mrb[0].mxu0
    %v452 = vpop.f32.mrb[0].mxu0
    %453 = vdwg.mxu0
    %v454 = vadd.f32 %v449, %v219
    %v455 = vsel %vm105, %v454, 0.0
    %456 = vadd.xlane.f32.xlu0 %v455
    %v457 = vpop.xlane.xlu0 %456
    %v458 = vmul.f32 %v457, %v224
    %v459 = vsub.f32 %v454, %v458
    %v460 = vmul.f32 %v459, %v459
    %v461 = vsel %vm105, %v460, 0.0
    %462 = vadd.xlane.f32.xlu0 %v461
    %v463 = vpop.xlane.xlu0 %462
    %v464 = vmul.f32 %v463, %v224
    %v465 = vadd.f32 %v464, 1e-05
    %v466 = vrsqrt.pop %v465
    %v467 = vmul.f32 %v459, %v466
    %v468 = vmul.f32 %v467, %v238
    %v469 = vadd.f32 %v468, %v243
    %470 = vst.msk [vmem:[#allocation8 + $0x8] sm:$0xff] %vm105, %v469
    %v471 = vld [vmem:[#allocation2 + $0x8] sm:$0xff]
    %v472 = vpack.c.bf16 %v471, %v471
    %v473 = vld [vmem:[#allocation2 + $0x18] sm:$0xff]
    %v474 = vpack.c.bf16 %v473, %v473
    %476 = vrot.lane.b32.xlu0 %v474, 64
    %v477 = vpop.permute.xlu0 %476
    %v479 = vsel %vm105, %v477, 0
    %481 = vmatprep.subr.bf16.mxu0 0
    %482 = vmatpush1.bf16.msra.mxu0 %v97
    %483 = vmatprep.subr.bf16.mxu0 0
    %484 = vmatpush1.bf16.msra.mxu0 %v98
    %485 = vmatprep.subr.bf16.mxu0 0
    %486 = vmatpush1.bf16.msra.mxu0 %v99
    %487 = vmatprep.subr.bf16.mxu0 0
    %488 = vmatpush1.bf16.msra.mxu0 %v100
    %489 = vmatprep.subr.bf16.mxu0 0
    %490 = vmatpush1.bf16.msra.mxu0 0
    %491 = vmatprep.subr.bf16.mxu0 0
    %492 = vmatpush1.bf16.msra.mxu0 0
    %493 = vmatprep.subr.bf16.mxu0 0
    %494 = vmatpush1.bf16.msra.mxu0 0
    %495 = vmatprep.subr.bf16.mxu0 0
    %496 = vmatpush1.bf16.msra.mxu0 0
    %497 = vmatprep.subr.bf16.mxu0 0
    %498 = vmatpush1.bf16.msra.mxu0 0
    %499 = vmatprep.subr.bf16.mxu0 0
    %500 = vmatpush1.bf16.msra.mxu0 0
    %501 = vmatprep.subr.bf16.mxu0 0
    %502 = vmatpush1.bf16.msra.mxu0 0
    %503 = vmatprep.subr.bf16.mxu0 0
    %504 = vmatpush1.bf16.msra.mxu0 0
    %505 = vmatprep.subr.bf16.mxu0 0
    %506 = vmatpush1.bf16.msra.mxu0 0
    %507 = vmatprep.subr.bf16.mxu0 0
    %508 = vmatpush1.bf16.msra.mxu0 0
    %509 = vmatprep.subr.bf16.mxu0 0
    %510 = vmatpush1.bf16.msra.mxu0 0
    %511 = vmatprep.subr.bf16.mxu0 0
    %512 = vmatpush1.bf16.msra.mxu0 0
    %513 = vmatprep.mubr.bf16.mxu0 0
    %514 = vmatmul.mubr.bf16.gmra.mrb[0].mxu0 %v479
    %v515 = vpop.f32.mrb[0].mxu0
    %v516 = vadd.f32 0.0, %v515
    %v517 = vpop.f32.mrb[0].mxu0
    %v518 = vpop.f32.mrb[0].mxu0
    %v519 = vpop.f32.mrb[0].mxu0
    %520 = vdwg.mxu0
    %522 = vrot.lane.b32.xlu0 %v472, 64
    %v523 = vpop.permute.xlu0 %522
    %v525 = vsel %vm105, %v523, 0
    %527 = vmatprep.subr.bf16.mxu0 0
    %528 = vmatpush1.bf16.msra.mxu0 %v165
    %529 = vmatprep.subr.bf16.mxu0 0
    %530 = vmatpush1.bf16.msra.mxu0 %v166
    %531 = vmatprep.subr.bf16.mxu0 0
    %532 = vmatpush1.bf16.msra.mxu0 %v167
    %533 = vmatprep.subr.bf16.mxu0 0
    %534 = vmatpush1.bf16.msra.mxu0 %v168
    %535 = vmatprep.subr.bf16.mxu0 0
    %536 = vmatpush1.bf16.msra.mxu0 0
    %537 = vmatprep.subr.bf16.mxu0 0
    %538 = vmatpush1.bf16.msra.mxu0 0
    %539 = vmatprep.subr.bf16.mxu0 0
    %540 = vmatpush1.bf16.msra.mxu0 0
    %541 = vmatprep.subr.bf16.mxu0 0
    %542 = vmatpush1.bf16.msra.mxu0 0
    %543 = vmatprep.subr.bf16.mxu0 0
    %544 = vmatpush1.bf16.msra.mxu0 0
    %545 = vmatprep.subr.bf16.mxu0 0
    %546 = vmatpush1.bf16.msra.mxu0 0
    %547 = vmatprep.subr.bf16.mxu0 0
    %548 = vmatpush1.bf16.msra.mxu0 0
    %549 = vmatprep.subr.bf16.mxu0 0
    %550 = vmatpush1.bf16.msra.mxu0 0
    %551 = vmatprep.subr.bf16.mxu0 0
    %552 = vmatpush1.bf16.msra.mxu0 0
    %553 = vmatprep.subr.bf16.mxu0 0
    %554 = vmatpush1.bf16.msra.mxu0 0
    %555 = vmatprep.subr.bf16.mxu0 0
    %556 = vmatpush1.bf16.msra.mxu0 0
    %557 = vmatprep.subr.bf16.mxu0 0
    %558 = vmatpush1.bf16.msra.mxu0 0
    %559 = vmatprep.mubr.bf16.mxu0 0
    %560 = vmatmul.mubr.bf16.gmra.mrb[0].mxu0 %v525
    %v561 = vpop.f32.mrb[0].mxu0
    %v562 = vadd.f32 %v516, %v561
    %v563 = vpop.f32.mrb[0].mxu0
    %v564 = vpop.f32.mrb[0].mxu0
    %v565 = vpop.f32.mrb[0].mxu0
    %566 = vdwg.mxu0
    %v567 = vadd.f32 %v562, %v219
    %v568 = vsel %vm105, %v567, 0.0
    %569 = vadd.xlane.f32.xlu0 %v568
    %v570 = vpop.xlane.xlu0 %569
    %v571 = vmul.f32 %v570, %v224
    %v572 = vsub.f32 %v567, %v571
    %v573 = vmul.f32 %v572, %v572
    %v574 = vsel %vm105, %v573, 0.0
    %575 = vadd.xlane.f32.xlu0 %v574
    %v576 = vpop.xlane.xlu0 %575
    %v577 = vmul.f32 %v576, %v224
    %v578 = vadd.f32 %v577, 1e-05
    %v579 = vrsqrt.pop %v578
    %v580 = vmul.f32 %v572, %v579
    %v581 = vmul.f32 %v580, %v238
    %v582 = vadd.f32 %v581, %v243
    %584 = vrot.lane.b32.xlu0 %v582, 64
    %v585 = vpop.permute.xlu0 %584
    %587 = vst.msk [vmem:[#allocation8 + $0x8] sm:$0xff] %vm362, %v585
    // Predicated region
    $region30: #{tpu_custom_call.1} parent=1 // pred_check
      _
    $region31: #{tpu_custom_call.1} parent=1 // pred_check_branch
      %589 = sbr.rel (0) target = $region33
    $region32: #{tpu_custom_call.1} parent=1 // pred_region
      %s591 = ssub.s32 256, 256
      %592 = vsyncadd [#allocation4], %s591
      %s594 = sshll.u32 [#allocation8], 4
      %s595 = int_to_ptr.vmem [resolvable:$true] %s594
      %597 = dma.vmem_to_hbm [thread:$0]  %s595, 256, %s4, [#allocation4]
    $region33: #{tpu_custom_call.1} parent=1 // pred_fallthru
      _
    // Predicated region
    $region34: #{tpu_custom_call.1} parent=1 // pred_check
      _
    $region35: #{tpu_custom_call.1} parent=1 // pred_check_branch
      %599 = sbr.rel (0) target = $region37
    $region36: #{tpu_custom_call.1} parent=1 // pred_region
      %600 = dma.done [#allocation4], 256
    $region37: #{tpu_custom_call.1} parent=1 // pred_fallthru
      _
    %601 = vsyncpa [#allocation3], 1
    %602 = vsyncpa [#allocation6], 1
    %603 = vsyncpa [#allocation4], 1

</llo_original>
